<compile_context>
chip_gen: v5e
topology: v5e:2x2
jax: 0.10.0
libtpu: 0.0.40
codegen_flags: <defaults>
</compile_context>

<pallas_src>
import functools

import jax
import jax.numpy as jnp
from jax import lax
from jax.experimental import pallas as pl
from jax.experimental.pallas import tpu as pltpu


_LANE = 128          # pad feature dims to this (lane-dense outputs, full MXU width)
_ROW_TILE = 256      # row tile for pipelined strips of A / features


def _round_up(x, m):
    return ((x + m - 1) // m) * m


def _row_tiling(n):
    """Return (padded_rows, row_tile). Single full tile for small n."""
    if n <= _ROW_TILE:
        n_pad = _round_up(max(n, 1), 16)     # 16: bf16 sublane packing safe
        return n_pad, n_pad
    n_pad = _round_up(n, _ROW_TILE)
    return n_pad, _ROW_TILE


# ----------------------------- Pallas kernels ------------------------------

def _mlp_kernel(feat_ref, w1_ref, b1_ref, w2_ref, b2_ref, out_ref):
    # temp_features = MLP_1(leaky_relu(MLP(features)))
    h = jnp.dot(feat_ref[...], w1_ref[...],
                preferred_element_type=jnp.float32) + b1_ref[...]
    h = jnp.where(h > 0, h, 0.01 * h)          # F.leaky_relu default slope 0.01
    out_ref[...] = jnp.dot(h, w2_ref[...],
                           preferred_element_type=jnp.float32) + b2_ref[...]


def _normalize_kernel(x_ref, xn_ref, xn_bf16_ref):
    # F.normalize(x, p=2, dim=1, eps=1e-12) == x / max(||x||, 1e-12)
    x = x_ref[...]
    ss = jnp.sum(x * x, axis=-1, keepdims=True)
    xn = x * lax.rsqrt(jnp.maximum(ss, 1e-24))     # rsqrt -> EUP slot
    xn_ref[...] = xn
    xn_bf16_ref[...] = xn.astype(jnp.bfloat16)     # pre-cast MXU operand once


def _gcn_hop1_kernel(a_ref, xn_res_ref, h_ref, h_bf16_ref):
    # a_ref: (TM, Np) bf16 strip of A_norm; xn_res_ref: (Np, Dp) bf16 resident.
    # h_tile = A_strip @ x_n   (bf16 operands, f32 accumulation)
    h = jnp.dot(a_ref[...], xn_res_ref[...], preferred_element_type=jnp.float32)
    h_ref[...] = h
    h_bf16_ref[...] = h.astype(jnp.bfloat16)       # operand for hop 2


def _gcn_hop2_kernel(a_ref, h_res_ref, xn_tile_ref, h_tile_ref, o_ref):
    # x_hat_tile = h_tile + x_n_tile + A_strip @ h
    h1 = jnp.dot(a_ref[...], h_res_ref[...], preferred_element_type=jnp.float32)
    o_ref[...] = h_tile_ref[...] + xn_tile_ref[...] + h1


# ------------------------------ Pallas wrappers -----------------------------

def pallas_mlp(features, w1, b1, w2, b2):
    """Row-tiled fused MLP; weights stay VMEM-resident across grid steps."""
    n, f = features.shape
    h4 = w1.shape[1]
    d = w2.shape[1]
    n_pad, tm = _row_tiling(n)
    if n_pad != n:
        features = jnp.pad(features, ((0, n_pad - n), (0, 0)))
    out = pl.pallas_call(
        _mlp_kernel,
        out_shape=jax.ShapeDtypeStruct((n_pad, d), jnp.float32),
        grid=(n_pad // tm,),
        in_specs=[
            pl.BlockSpec((tm, f), lambda i: (i, 0)),     # features strip (pipelined)
            pl.BlockSpec((f, h4), lambda i: (0, 0)),     # weights resident
            pl.BlockSpec((1, h4), lambda i: (0, 0)),
            pl.BlockSpec((h4, d), lambda i: (0, 0)),
            pl.BlockSpec((1, d), lambda i: (0, 0)),
        ],
        out_specs=pl.BlockSpec((tm, d), lambda i: (i, 0)),
        compiler_params=pltpu.CompilerParams(dimension_semantics=("parallel",)),
    )(features, w1, b1, w2, b2)
    return out[:n]


def pallas_normalize(x_raw):
    """Row-tiled L2 normalize; emits f32 x_n and bf16 x_n in one pass."""
    n_pad, d = x_raw.shape
    _, tm = _row_tiling(n_pad)
    return pl.pallas_call(
        _normalize_kernel,
        out_shape=(jax.ShapeDtypeStruct((n_pad, d), jnp.float32),
                   jax.ShapeDtypeStruct((n_pad, d), jnp.bfloat16)),
        grid=(n_pad // tm,),
        in_specs=[pl.BlockSpec((tm, d), lambda i: (i, 0))],
        out_specs=(pl.BlockSpec((tm, d), lambda i: (i, 0)),
                   pl.BlockSpec((tm, d), lambda i: (i, 0))),
        compiler_params=pltpu.CompilerParams(dimension_semantics=("parallel",)),
    )(x_raw)


def pallas_gcn_hop1(a_bf16, xn_bf16):
    """h = A_norm @ x_n.  A row-tiled, x_n resident; also emits bf16 h."""
    n_pad, d = xn_bf16.shape
    _, tm = _row_tiling(n_pad)
    return pl.pallas_call(
        _gcn_hop1_kernel,
        out_shape=(jax.ShapeDtypeStruct((n_pad, d), jnp.float32),
                   jax.ShapeDtypeStruct((n_pad, d), jnp.bfloat16)),
        grid=(n_pad // tm,),
        in_specs=[
            pl.BlockSpec((tm, n_pad), lambda i: (i, 0)),   # A strip (bf16, pipelined)
            pl.BlockSpec((n_pad, d), lambda i: (0, 0)),    # x_n resident (bf16)
        ],
        out_specs=(pl.BlockSpec((tm, d), lambda i: (i, 0)),
                   pl.BlockSpec((tm, d), lambda i: (i, 0))),
        compiler_params=pltpu.CompilerParams(dimension_semantics=("parallel",)),
    )(a_bf16, xn_bf16)


def pallas_gcn_hop2(a_bf16, h_bf16, xn_f32, h_f32):
    """x_hat = h + x_n + A_norm @ h, row-tiled."""
    n_pad, d = h_f32.shape
    _, tm = _row_tiling(n_pad)
    return pl.pallas_call(
        _gcn_hop2_kernel,
        out_shape=jax.ShapeDtypeStruct((n_pad, d), jnp.float32),
        grid=(n_pad // tm,),
        in_specs=[
            pl.BlockSpec((tm, n_pad), lambda i: (i, 0)),   # A strip
            pl.BlockSpec((n_pad, d), lambda i: (0, 0)),    # h resident (bf16, for A@h)
            pl.BlockSpec((tm, d), lambda i: (i, 0)),       # x_n tile (residual)
            pl.BlockSpec((tm, d), lambda i: (i, 0)),       # h tile (residual)
        ],
        out_specs=pl.BlockSpec((tm, d), lambda i: (i, 0)),
        compiler_params=pltpu.CompilerParams(dimension_semantics=("parallel",)),
    )(a_bf16, h_bf16, xn_f32, h_f32)


# ------------------------------ Glue / module -------------------------------

def build_normalized_adjacency(edge_index, num_nodes):
    """Dense symmetric-normalized adjacency matching Base_gcn(aggr='add').

    h[dst] += deg(src)^-0.5 * deg(dst)^-0.5 * x[src]; deg from edge_index[0]
    occurrences, self loops removed, zero-degree nodes masked (no inf/NaN).
    """
    src, dst = edge_index[0], edge_index[1]
    keep = src != dst                      # remove_self_loops
    src = jnp.where(keep, src, 0)
    dst = jnp.where(keep, dst, 0)
    w = keep.astype(jnp.float32)

    deg = jnp.zeros((num_nodes,), jnp.float32).at[src].add(w)
    deg_inv_sqrt = jnp.where(deg > 0, lax.rsqrt(jnp.maximum(deg, 1e-30)), 0.0)
    norm = deg_inv_sqrt[src] * deg_inv_sqrt[dst] * w

    a = jnp.zeros((num_nodes, num_nodes), jnp.float32)
    a = a.at[dst, src].add(norm)
    return a


class GCNPallas:
    def __init__(self, num_user, num_item, dim_feat, dim_latent, key):
        self.num_user = num_user
        self.num_item = num_item
        self.dim_feat = dim_feat
        self.dim_latent = dim_latent

        k_pref, k_w1, k_b1, k_w2, k_b2 = jax.random.split(key, 5)
        # preference: xavier_normal_(num_user, dim_latent), gain=1
        xav_std = (2.0 / (num_user + dim_latent)) ** 0.5
        self.preference = xav_std * jax.random.normal(
            k_pref, (num_user, dim_latent), jnp.float32)
        # MLP: Linear(dim_feat, 4*dim_latent); MLP_1: Linear(4*dim_latent, dim_latent)
        h4 = 4 * dim_latent
        self.w1 = jax.random.normal(k_w1, (dim_feat, h4), jnp.float32) * (dim_feat ** -0.5)
        self.b1 = jax.random.normal(k_b1, (1, h4), jnp.float32) * 0.01
        self.w2 = jax.random.normal(k_w2, (h4, dim_latent), jnp.float32) * (h4 ** -0.5)
        self.b2 = jax.random.normal(k_b2, (1, dim_latent), jnp.float32) * 0.01

    @functools.partial(jax.jit, static_argnums=0)
    def forward(self, edge_index, features):
        num_nodes = self.num_user + self.num_item
        h4 = 4 * self.dim_latent
        d_pad = _round_up(self.dim_latent, _LANE)
        h4_pad = _round_up(h4, _LANE)
        f_pad = _round_up(self.dim_feat, _LANE)

        # Zero-pad weights/features to lane-dense widths (exact: pads are 0).
        w1 = jnp.pad(self.w1, ((0, f_pad - self.dim_feat), (0, h4_pad - h4)))
        b1 = jnp.pad(self.b1, ((0, 0), (0, h4_pad - h4)))
        w2 = jnp.pad(self.w2, ((0, h4_pad - h4), (0, d_pad - self.dim_latent)))
        b2 = jnp.pad(self.b2, ((0, 0), (0, d_pad - self.dim_latent)))
        feats = jnp.pad(features, ((0, 0), (0, f_pad - self.dim_feat)))

        # temp_features = MLP_1(leaky_relu(MLP(features)))      [Pallas kernel]
        temp = pallas_mlp(feats, w1, b1, w2, b2)                 # (num_item, d_pad)

        # x = cat((preference, temp_features), dim=0); pad node rows for tiling.
        pref = jnp.pad(self.preference, ((0, 0), (0, d_pad - self.dim_latent)))
        x_raw = jnp.concatenate([pref, temp], axis=0)            # (N, d_pad)
        n_pad, _ = _row_tiling(num_nodes)
        x_raw = jnp.pad(x_raw, ((0, n_pad - num_nodes), (0, 0)))

        # x = F.normalize(x)                                     [Pallas kernel]
        x_n, x_n_bf16 = pallas_normalize(x_raw)

        # Dense normalized adjacency (bf16: halved HBM traffic / 2x MXU rate).
        a = build_normalized_adjacency(edge_index, num_nodes)
        a = jnp.pad(a, ((0, n_pad - num_nodes), (0, n_pad - num_nodes)))
        a = a.astype(jnp.bfloat16)

        # h = conv(x); h1 = conv(h); x_hat = h + x + h1          [Pallas kernels]
        h, h_bf16 = pallas_gcn_hop1(a, x_n_bf16)
        x_hat = pallas_gcn_hop2(a, h_bf16, x_n, h)

        x_hat = x_hat[:num_nodes, :self.dim_latent]
        return x_hat, self.preference


# ---------------------------------- main ------------------------------------

if __name__ == "__main__":
    num_user = 8
    num_item = 8
    dim_feat = 32     # features_dim
    dim_latent = 16

    key = jax.random.PRNGKey(0)
    k_params, k_feat = jax.random.split(key)

    model = GCNPallas(num_user, num_item, dim_feat, dim_latent, k_params)

    # item features (num_item, dim_feat)
    features = jax.random.normal(k_feat, (num_item, dim_feat), jnp.float32)

    # bipartite user<->item edges (both directions), node ids:
    # users = [0, num_user), items = [num_user, num_user+num_item)
    users = jnp.arange(num_item) % num_user
    items = jnp.arange(num_item) + num_user
    users2 = (jnp.arange(num_item) + 1) % num_user
    src = jnp.concatenate([users, items, users2, items])
    dst = jnp.concatenate([items, users, items, users2])
    edge_index = jnp.stack([src, dst]).astype(jnp.int32)  # (2, E)

    x_hat, preference = model.forward(edge_index, features)
    jax.block_until_ready((x_hat, preference))

    assert x_hat.shape == (num_user + num_item, dim_latent)
    assert preference.shape == (num_user, dim_latent)
    assert bool(jnp.all(jnp.isfinite(x_hat)))

    print("KERNEL_OK")
</pallas_src>

<mosaic_0001>
module attributes {stable_mosaic.version = 11 : i64} {
  func.func @_normalize_kernel(%arg0: i32, %arg1: memref<16x128xf32, #tpu.memory_space<vmem>>, %arg2: memref<16x128xf32, #tpu.memory_space<vmem>>, %arg3: memref<16x128xbf16, #tpu.memory_space<vmem>>) attributes {dimension_semantics = [#tpu.dimension_semantics<parallel>], iteration_bounds = array<i64: 1>, scalar_prefetch = 0 : i64, scratch_operands = 0 : i64, tpu.core_type = #tpu.core_type<tc>, window_params = [{transform_indices = @transform_0, window_bounds = array<i64: 16, 128>}, {transform_indices = @transform_1, window_bounds = array<i64: 16, 128>}, {transform_indices = @transform_2, window_bounds = array<i64: 16, 128>}]} {
    %c0 = arith.constant 0 : index
    %c0_0 = arith.constant 0 : index
    %0 = vector.load %arg1[%c0, %c0_0] : memref<16x128xf32, #tpu.memory_space<vmem>>, vector<16x128xf32>
    %1 = arith.mulf %0, %0 : vector<16x128xf32>
    %cst = arith.constant dense<0.000000e+00> : vector<16xf32>
    %2 = vector.multi_reduction <add>, %1, %cst [1] : vector<16x128xf32> to vector<16xf32>
    %3 = vector.shape_cast %2 : vector<16xf32> to vector<16x1xf32>
    %cst_1 = arith.constant 1.000000e-24 : f32
    %4 = vector.broadcast %cst_1 : f32 to vector<16x1xf32>
    %5 = arith.maximumf %3, %4 : vector<16x1xf32>
    %6 = math.rsqrt %5 : vector<16x1xf32>
    %7 = vector.broadcast %6 : vector<16x1xf32> to vector<16x128xf32>
    %8 = arith.mulf %0, %7 : vector<16x128xf32>
    %c0_2 = arith.constant 0 : index
    %c0_3 = arith.constant 0 : index
    %9 = vector.load %arg2[%c0_2, %c0_3] : memref<16x128xf32, #tpu.memory_space<vmem>>, vector<16x128xf32>
    tpu.vector_store %arg2[%c0_2, %c0_3], %8 {strides = array<i32>} : memref<16x128xf32, #tpu.memory_space<vmem>>, vector<16x128xf32>,
    %10 = arith.truncf %8 : vector<16x128xf32> to vector<16x128xbf16>
    %c0_4 = arith.constant 0 : index
    %c0_5 = arith.constant 0 : index
    %11 = vector.load %arg3[%c0_4, %c0_5] : memref<16x128xbf16, #tpu.memory_space<vmem>>, vector<16x128xbf16>
    tpu.vector_store %arg3[%c0_4, %c0_5], %10 {strides = array<i32>} : memref<16x128xbf16, #tpu.memory_space<vmem>>, vector<16x128xbf16>,
    return
  }
  func.func @transform_0(%arg0: i32) -> (i32, i32) {
    %c0_i32 = arith.constant 0 : i32
    %c0_i32_0 = arith.constant 0 : i32
    return %arg0, %c0_i32 : i32, i32
  }
  func.func @transform_1(%arg0: i32) -> (i32, i32) {
    %c0_i32 = arith.constant 0 : i32
    %c0_i32_0 = arith.constant 0 : i32
    return %arg0, %c0_i32 : i32, i32
  }
  func.func @transform_2(%arg0: i32) -> (i32, i32) {
    %c0_i32 = arith.constant 0 : i32
    %c0_i32_0 = arith.constant 0 : i32
    return %arg0, %c0_i32 : i32, i32
  }
}

module attributes {stable_mosaic.version = 11 : i64} {
  func.func @_mlp_kernel(%arg0: i32, %arg1: memref<16x128xf32, #tpu.memory_space<vmem>>, %arg2: memref<128x128xf32, #tpu.memory_space<vmem>>, %arg3: memref<1x128xf32, #tpu.memory_space<vmem>>, %arg4: memref<128x128xf32, #tpu.memory_space<vmem>>, %arg5: memref<1x128xf32, #tpu.memory_space<vmem>>, %arg6: memref<16x128xf32, #tpu.memory_space<vmem>>) attributes {dimension_semantics = [#tpu.dimension_semantics<parallel>], iteration_bounds = array<i64: 1>, scalar_prefetch = 0 : i64, scratch_operands = 0 : i64, tpu.core_type = #tpu.core_type<tc>, window_params = [{transform_indices = @transform_0, window_bounds = array<i64: 16, 128>}, {pipeline_mode = #tpu.pipeline_mode<synchronous>, transform_indices = @transform_1, window_bounds = array<i64: 128, 128>}, {pipeline_mode = #tpu.pipeline_mode<synchronous>, transform_indices = @transform_2, window_bounds = array<i64: 1, 128>}, {pipeline_mode = #tpu.pipeline_mode<synchronous>, transform_indices = @transform_3, window_bounds = array<i64: 128, 128>}, {pipeline_mode = #tpu.pipeline_mode<synchronous>, transform_indices = @transform_4, window_bounds = array<i64: 1, 128>}, {transform_indices = @transform_5, window_bounds = array<i64: 16, 128>}]} {
    %c0 = arith.constant 0 : index
    %c0_0 = arith.constant 0 : index
    %0 = vector.load %arg1[%c0, %c0_0] : memref<16x128xf32, #tpu.memory_space<vmem>>, vector<16x128xf32>
    %c0_1 = arith.constant 0 : index
    %c0_2 = arith.constant 0 : index
    %1 = vector.load %arg2[%c0_1, %c0_2] : memref<128x128xf32, #tpu.memory_space<vmem>>, vector<128x128xf32>
    %cst = arith.constant dense<0.000000e+00> : vector<16x128xf32>
    %2 = tpu.matmul %0, %1, %cst {dimension_numbers = #tpu.dot_dimension_numbers<[1], [0], [0], [1], [0, 0, 1, 1], [], []>} : vector<16x128xf32>, vector<128x128xf32>, vector<16x128xf32> -> vector<16x128xf32>
    %c0_3 = arith.constant 0 : index
    %c0_4 = arith.constant 0 : index
    %3 = vector.load %arg3[%c0_3, %c0_4] : memref<1x128xf32, #tpu.memory_space<vmem>>, vector<1x128xf32>
    %4 = vector.broadcast %3 : vector<1x128xf32> to vector<16x128xf32>
    %5 = arith.addf %2, %4 : vector<16x128xf32>
    %cst_5 = arith.constant 0.000000e+00 : f32
    %6 = vector.broadcast %cst_5 : f32 to vector<16x128xf32>
    %7 = arith.cmpf ogt, %5, %6 : vector<16x128xf32>
    %cst_6 = arith.constant 0.00999999977 : f32
    %8 = vector.broadcast %cst_6 : f32 to vector<16x128xf32>
    %9 = arith.mulf %8, %5 : vector<16x128xf32>
    %10 = arith.select %7, %5, %9 : vector<16x128xi1>, vector<16x128xf32>
    %c0_7 = arith.constant 0 : index
    %c0_8 = arith.constant 0 : index
    %11 = vector.load %arg4[%c0_7, %c0_8] : memref<128x128xf32, #tpu.memory_space<vmem>>, vector<128x128xf32>
    %cst_9 = arith.constant dense<0.000000e+00> : vector<16x128xf32>
    %12 = tpu.matmul %10, %11, %cst_9 {dimension_numbers = #tpu.dot_dimension_numbers<[1], [0], [0], [1], [0, 0, 1, 1], [], []>} : vector<16x128xf32>, vector<128x128xf32>, vector<16x128xf32> -> vector<16x128xf32>
    %c0_10 = arith.constant 0 : index
    %c0_11 = arith.constant 0 : index
    %13 = vector.load %arg5[%c0_10, %c0_11] : memref<1x128xf32, #tpu.memory_space<vmem>>, vector<1x128xf32>
    %14 = vector.broadcast %13 : vector<1x128xf32> to vector<16x128xf32>
    %15 = arith.addf %12, %14 : vector<16x128xf32>
    %c0_12 = arith.constant 0 : index
    %c0_13 = arith.constant 0 : index
    %16 = vector.load %arg6[%c0_12, %c0_13] : memref<16x128xf32, #tpu.memory_space<vmem>>, vector<16x128xf32>
    tpu.vector_store %arg6[%c0_12, %c0_13], %15 {strides = array<i32>} : memref<16x128xf32, #tpu.memory_space<vmem>>, vector<16x128xf32>,
    return
  }
  func.func @transform_0(%arg0: i32) -> (i32, i32) {
    %c0_i32 = arith.constant 0 : i32
    %c0_i32_0 = arith.constant 0 : i32
    return %arg0, %c0_i32 : i32, i32
  }
  func.func @transform_1(%arg0: i32) -> (i32, i32) {
    %c0_i32 = arith.constant 0 : i32
    %c0_i32_0 = arith.constant 0 : i32
    %c0_i32_1 = arith.constant 0 : i32
    return %c0_i32, %c0_i32_0 : i32, i32
  }
  func.func @transform_2(%arg0: i32) -> (i32, i32) {
    %c0_i32 = arith.constant 0 : i32
    %c0_i32_0 = arith.constant 0 : i32
    %c0_i32_1 = arith.constant 0 : i32
    return %c0_i32, %c0_i32_0 : i32, i32
  }
  func.func @transform_3(%arg0: i32) -> (i32, i32) {
    %c0_i32 = arith.constant 0 : i32
    %c0_i32_0 = arith.constant 0 : i32
    %c0_i32_1 = arith.constant 0 : i32
    return %c0_i32, %c0_i32_0 : i32, i32
  }
  func.func @transform_4(%arg0: i32) -> (i32, i32) {
    %c0_i32 = arith.constant 0 : i32
    %c0_i32_0 = arith.constant 0 : i32
    %c0_i32_1 = arith.constant 0 : i32
    return %c0_i32, %c0_i32_0 : i32, i32
  }
  func.func @transform_5(%arg0: i32) -> (i32, i32) {
    %c0_i32 = arith.constant 0 : i32
    %c0_i32_0 = arith.constant 0 : i32
    return %arg0, %c0_i32 : i32, i32
  }
}

module attributes {stable_mosaic.version = 11 : i64} {
  func.func @_gcn_hop1_kernel(%arg0: i32, %arg1: memref<16x16xbf16, #tpu.memory_space<vmem>>, %arg2: memref<16x128xbf16, #tpu.memory_space<vmem>>, %arg3: memref<16x128xf32, #tpu.memory_space<vmem>>, %arg4: memref<16x128xbf16, #tpu.memory_space<vmem>>) attributes {dimension_semantics = [#tpu.dimension_semantics<parallel>], iteration_bounds = array<i64: 1>, scalar_prefetch = 0 : i64, scratch_operands = 0 : i64, tpu.core_type = #tpu.core_type<tc>, window_params = [{transform_indices = @transform_0, window_bounds = array<i64: 16, 16>}, {pipeline_mode = #tpu.pipeline_mode<synchronous>, transform_indices = @transform_1, window_bounds = array<i64: 16, 128>}, {transform_indices = @transform_2, window_bounds = array<i64: 16, 128>}, {transform_indices = @transform_3, window_bounds = array<i64: 16, 128>}]} {
    %c0 = arith.constant 0 : index
    %c0_0 = arith.constant 0 : index
    %0 = vector.load %arg1[%c0, %c0_0] : memref<16x16xbf16, #tpu.memory_space<vmem>>, vector<16x16xbf16>
    %c0_1 = arith.constant 0 : index
    %c0_2 = arith.constant 0 : index
    %1 = vector.load %arg2[%c0_1, %c0_2] : memref<16x128xbf16, #tpu.memory_space<vmem>>, vector<16x128xbf16>
    %cst = arith.constant dense<0.000000e+00> : vector<16x128xf32>
    %2 = tpu.matmul %0, %1, %cst {dimension_numbers = #tpu.dot_dimension_numbers<[1], [0], [0], [1], [0, 0, 1, 1], [], []>} : vector<16x16xbf16>, vector<16x128xbf16>, vector<16x128xf32> -> vector<16x128xf32>
    %c0_3 = arith.constant 0 : index
    %c0_4 = arith.constant 0 : index
    %3 = vector.load %arg3[%c0_3, %c0_4] : memref<16x128xf32, #tpu.memory_space<vmem>>, vector<16x128xf32>
    tpu.vector_store %arg3[%c0_3, %c0_4], %2 {strides = array<i32>} : memref<16x128xf32, #tpu.memory_space<vmem>>, vector<16x128xf32>,
    %4 = arith.truncf %2 : vector<16x128xf32> to vector<16x128xbf16>
    %c0_5 = arith.constant 0 : index
    %c0_6 = arith.constant 0 : index
    %5 = vector.load %arg4[%c0_5, %c0_6] : memref<16x128xbf16, #tpu.memory_space<vmem>>, vector<16x128xbf16>
    tpu.vector_store %arg4[%c0_5, %c0_6], %4 {strides = array<i32>} : memref<16x128xbf16, #tpu.memory_space<vmem>>, vector<16x128xbf16>,
    return
  }
  func.func @transform_0(%arg0: i32) -> (i32, i32) {
    %c0_i32 = arith.constant 0 : i32
    %c0_i32_0 = arith.constant 0 : i32
    return %arg0, %c0_i32 : i32, i32
  }
  func.func @transform_1(%arg0: i32) -> (i32, i32) {
    %c0_i32 = arith.constant 0 : i32
    %c0_i32_0 = arith.constant 0 : i32
    %c0_i32_1 = arith.constant 0 : i32
    return %c0_i32, %c0_i32_0 : i32, i32
  }
  func.func @transform_2(%arg0: i32) -> (i32, i32) {
    %c0_i32 = arith.constant 0 : i32
    %c0_i32_0 = arith.constant 0 : i32
    return %arg0, %c0_i32 : i32, i32
  }
  func.func @transform_3(%arg0: i32) -> (i32, i32) {
    %c0_i32 = arith.constant 0 : i32
    %c0_i32_0 = arith.constant 0 : i32
    return %arg0, %c0_i32 : i32, i32
  }
}

module attributes {stable_mosaic.version = 11 : i64} {
  func.func @_gcn_hop2_kernel(%arg0: i32, %arg1: memref<16x16xbf16, #tpu.memory_space<vmem>>, %arg2: memref<16x128xbf16, #tpu.memory_space<vmem>>, %arg3: memref<16x128xf32, #tpu.memory_space<vmem>>, %arg4: memref<16x128xf32, #tpu.memory_space<vmem>>, %arg5: memref<16x128xf32, #tpu.memory_space<vmem>>) attributes {dimension_semantics = [#tpu.dimension_semantics<parallel>], iteration_bounds = array<i64: 1>, scalar_prefetch = 0 : i64, scratch_operands = 0 : i64, tpu.core_type = #tpu.core_type<tc>, window_params = [{transform_indices = @transform_0, window_bounds = array<i64: 16, 16>}, {pipeline_mode = #tpu.pipeline_mode<synchronous>, transform_indices = @transform_1, window_bounds = array<i64: 16, 128>}, {transform_indices = @transform_2, window_bounds = array<i64: 16, 128>}, {transform_indices = @transform_3, window_bounds = array<i64: 16, 128>}, {transform_indices = @transform_4, window_bounds = array<i64: 16, 128>}]} {
    %c0 = arith.constant 0 : index
    %c0_0 = arith.constant 0 : index
    %0 = vector.load %arg1[%c0, %c0_0] : memref<16x16xbf16, #tpu.memory_space<vmem>>, vector<16x16xbf16>
    %c0_1 = arith.constant 0 : index
    %c0_2 = arith.constant 0 : index
    %1 = vector.load %arg2[%c0_1, %c0_2] : memref<16x128xbf16, #tpu.memory_space<vmem>>, vector<16x128xbf16>
    %cst = arith.constant dense<0.000000e+00> : vector<16x128xf32>
    %2 = tpu.matmul %0, %1, %cst {dimension_numbers = #tpu.dot_dimension_numbers<[1], [0], [0], [1], [0, 0, 1, 1], [], []>} : vector<16x16xbf16>, vector<16x128xbf16>, vector<16x128xf32> -> vector<16x128xf32>
    %c0_3 = arith.constant 0 : index
    %c0_4 = arith.constant 0 : index
    %3 = vector.load %arg4[%c0_3, %c0_4] : memref<16x128xf32, #tpu.memory_space<vmem>>, vector<16x128xf32>
    %c0_5 = arith.constant 0 : index
    %c0_6 = arith.constant 0 : index
    %4 = vector.load %arg3[%c0_5, %c0_6] : memref<16x128xf32, #tpu.memory_space<vmem>>, vector<16x128xf32>
    %5 = arith.addf %3, %4 : vector<16x128xf32>
    %6 = arith.addf %5, %2 : vector<16x128xf32>
    %c0_7 = arith.constant 0 : index
    %c0_8 = arith.constant 0 : index
    %7 = vector.load %arg5[%c0_7, %c0_8] : memref<16x128xf32, #tpu.memory_space<vmem>>, vector<16x128xf32>
    tpu.vector_store %arg5[%c0_7, %c0_8], %6 {strides = array<i32>} : memref<16x128xf32, #tpu.memory_space<vmem>>, vector<16x128xf32>,
    return
  }
  func.func @transform_0(%arg0: i32) -> (i32, i32) {
    %c0_i32 = arith.constant 0 : i32
    %c0_i32_0 = arith.constant 0 : i32
    return %arg0, %c0_i32 : i32, i32
  }
  func.func @transform_1(%arg0: i32) -> (i32, i32) {
    %c0_i32 = arith.constant 0 : i32
    %c0_i32_0 = arith.constant 0 : i32
    %c0_i32_1 = arith.constant 0 : i32
    return %c0_i32, %c0_i32_0 : i32, i32
  }
  func.func @transform_2(%arg0: i32) -> (i32, i32) {
    %c0_i32 = arith.constant 0 : i32
    %c0_i32_0 = arith.constant 0 : i32
    return %arg0, %c0_i32 : i32, i32
  }
  func.func @transform_3(%arg0: i32) -> (i32, i32) {
    %c0_i32 = arith.constant 0 : i32
    %c0_i32_0 = arith.constant 0 : i32
    return %arg0, %c0_i32 : i32, i32
  }
  func.func @transform_4(%arg0: i32) -> (i32, i32) {
    %c0_i32 = arith.constant 0 : i32
    %c0_i32_0 = arith.constant 0 : i32
    return %arg0, %c0_i32 : i32, i32
  }
}

</mosaic_0001>

<llo_original>
// kernel: forward.5
$region0: #{forward.5}
  #allocation0 [shape = 'u32[]', space=smem, size = 0x4, offset = 0x4, fixed_abs, tag = 'smem constant byte address 0x4 - core index']
  #allocation1 [shape = 'u32[72,128]{1,0:T(1,128)}', space=vmem, size = 0x9000, scoped, tag = 'internal scratch']
  %s0 = inlined_call_operand.vmem [shape: f32[16,128], index: 0, kind: input, shape index: {}]
  %s1 = inlined_call_operand.vmem [shape: f32[16,128], index: 1, kind: output, shape index: {0}]
  %s2 = inlined_call_operand.vmem [shape: bf16[16,128], index: 2, kind: output, shape index: {1}]
  %3 = xla_tuple %s1, %s2
  %s4 = sld [smem:[#allocation0]]
  $region22: #{forward.5} parent=0
    _
  %s6 = ssub.s32 1, %s4
  %s7 = scalar_select 0, %s6, %s4
  // Predicated region
  $region2: #{forward.5} parent=0 // pred_check
    _
  $region3: #{forward.5} parent=0 // pred_check_branch
    %9 = sbr.rel (0) target = $region5
  $region4: #{forward.5} parent=0 // pred_region
    _
  $region5: #{forward.5} parent=0 // pred_fallthru
    _
  %v10 = vld [vmem:[%s0] sm:$0xff]
  %v11 = vld [vmem:[%s0 + $0x8] sm:$0xff]
  %v12 = vmul.f32 %v10, %v10
  %v13 = vmul.f32 %v11, %v11
  %14 = vadd.xlane.f32.xlu0 %v12
  %v15 = vpop.xlane.xlu0 %14
  %16 = vadd.xlane.f32.xlu0 %v13
  %v17 = vpop.xlane.xlu0 %16
  %v18 = vmax.f32 %v15, 1e-24
  %v19 = vmax.f32 %v17, 1e-24
  %v20 = vrsqrt.pop %v18
  %v21 = vmul.f32 %v20, %v18
  %v22 = vmul.f32 %v21, %v20
  %v23 = vmul.f32 0.5, %v22
  %v24 = vsub.f32 1.5, %v23
  %v25 = vmul.f32 %v20, %v24
  %vm26 = vweird.f32 %v18
  %vm27 = vweird.f32 %v20
  %vm28 = vmor %vm26, %vm27
  %v29 = vsel %vm28, %v20, %v25
  %v30 = vrsqrt.pop %v19
  %v31 = vmul.f32 %v30, %v19
  %v32 = vmul.f32 %v31, %v30
  %v33 = vmul.f32 0.5, %v32
  %v34 = vsub.f32 1.5, %v33
  %v35 = vmul.f32 %v30, %v34
  %vm36 = vweird.f32 %v19
  %vm37 = vweird.f32 %v30
  %vm38 = vmor %vm36, %vm37
  %v39 = vsel %vm38, %v30, %v35
  %v40 = vmul.f32 %v10, %v29
  %v41 = vmul.f32 %v11, %v39
  %42 = vst [vmem:[%s1] sm:$0xff] %v40
  %43 = vst [vmem:[%s1 + $0x8] sm:$0xff] %v41
  %v44 = vpack.c.bf16 %v40, %v40
  %v45 = vpack.c.bf16 %v41, %v41
  %46 = vst [vmem:[%s2] sm:$0xf] %v44
  %47 = vst [vmem:[%s2 + $0x4] sm:$0xf] %v45
  // Predicated region
  $region6: #{forward.5} parent=0 // pred_check
    _
  $region7: #{forward.5} parent=0 // pred_check_branch
    %49 = sbr.rel (0) target = $region9
  $region8: #{forward.5} parent=0 // pred_region
    _
  $region9: #{forward.5} parent=0 // pred_fallthru
    _
  // Predicated region
  $region10: #{forward.5} parent=0 // pred_check
    _
  $region11: #{forward.5} parent=0 // pred_check_branch
    %51 = sbr.rel (0) target = $region13
  $region12: #{forward.5} parent=0 // pred_region
    _
  $region13: #{forward.5} parent=0 // pred_fallthru
    _
  // Predicated region
  $region14: #{forward.5} parent=0 // pred_check
    _
  $region15: #{forward.5} parent=0 // pred_check_branch
    %53 = sbr.rel (0) target = $region17
  $region16: #{forward.5} parent=0 // pred_region
    _
  $region17: #{forward.5} parent=0 // pred_fallthru
    _
  // Predicated region
  $region18: #{forward.5} parent=0 // pred_check
    _
  $region19: #{forward.5} parent=0 // pred_check_branch
    %55 = sbr.rel (0) target = $region21
  $region20: #{forward.5} parent=0 // pred_region
    _
  $region21: #{forward.5} parent=0 // pred_fallthru
    _

// kernel: forward.6
$region0: #{forward.6}
  #allocation0 [shape = 'u32[]', space=smem, size = 0x4, offset = 0x4, fixed_abs, tag = 'smem constant byte address 0x4 - core index']
  #allocation1 [shape = 'u32[72,128]{1,0:T(1,128)}', space=vmem, size = 0x9000, scoped, tag = 'internal scratch']
  %s0 = inlined_call_operand.vmem [shape: bf16[16,16], index: 0, kind: input, shape index: {}]
  %s1 = inlined_call_operand.vmem [shape: bf16[16,128], index: 1, kind: input, shape index: {}]
  %s2 = inlined_call_operand.vmem [shape: f32[16,128], index: 2, kind: output, shape index: {0}]
  %s3 = inlined_call_operand.vmem [shape: bf16[16,128], index: 3, kind: output, shape index: {1}]
  %4 = xla_tuple %s2, %s3
  %s5 = sld [smem:[#allocation0]]
  $region26: #{forward.6} parent=0
    _
  %s7 = ssub.s32 1, %s5
  %s8 = scalar_select 0, %s7, %s5
  // Predicated region
  $region2: #{forward.6} parent=0 // pred_check
    _
  $region3: #{forward.6} parent=0 // pred_check_branch
    %10 = sbr.rel (0) target = $region5
  $region4: #{forward.6} parent=0 // pred_region
    _
  $region5: #{forward.6} parent=0 // pred_fallthru
    _
  // Predicated region
  $region6: #{forward.6} parent=0 // pred_check
    _
  $region7: #{forward.6} parent=0 // pred_check_branch
    %12 = sbr.rel (0) target = $region9
  $region8: #{forward.6} parent=0 // pred_region
    _
  $region9: #{forward.6} parent=0 // pred_fallthru
    _
  %v14 = vld [vmem:[%s0] sm:$0xf]
  %v15 = vld [vmem:[%s0 + $0x4] sm:$0xf]
  %v16 = vld [vmem:[%s1] sm:$0xf]
  %v17 = vld [vmem:[%s1 + $0x4] sm:$0xf]
  %v20 = vunpack.c.l.b16 %v14
  %v21 = vunpack.c.l.b16 %v15
  %v22 = vpack.c.b16 %v21, %v20
  %v25 = vunpack.c.l.b16 %v16
  %v26 = vunpack.c.l.b16 %v17
  %v27 = vpack.c.b16 %v26, %v25
  %vm29 = vcmask 130048
  %v31 = vsel %vm29, %v22, 0
  %33 = vmatpush.bf16.msra.mxu0 0
  %34 = vmatpush.bf16.msra.mxu0 0
  %35 = vmatpush.bf16.msra.mxu0 0
  %36 = vmatpush.bf16.msra.mxu0 0
  %37 = vmatpush.bf16.msra.mxu0 0
  %38 = vmatpush.bf16.msra.mxu0 0
  %39 = vmatpush.bf16.msra.mxu0 0
  %40 = vmatpush.bf16.msra.mxu0 %v27
  %41 = vmatmul.bf16.gmra.mxu0 %v31
  %v42 = vpop.f32.mrf.mxu0
  %v43 = vadd.f32 0.0, %v42
  %v44 = vpop.f32.mrf.mxu0
  %v45 = vadd.f32 0.0, %v44
  %46 = vdwg.mxu0
  %47 = vst [vmem:[%s2] sm:$0xff] %v43
  %48 = vst [vmem:[%s2 + $0x8] sm:$0xff] %v45
  %v49 = vpack.c.bf16 %v43, %v43
  %v50 = vpack.c.bf16 %v45, %v45
  %51 = vst [vmem:[%s3] sm:$0xf] %v49
  %52 = vst [vmem:[%s3 + $0x4] sm:$0xf] %v50
  // Predicated region
  $region10: #{forward.6} parent=0 // pred_check
    _
  $region11: #{forward.6} parent=0 // pred_check_branch
    %54 = sbr.rel (0) target = $region13
  $region12: #{forward.6} parent=0 // pred_region
    _
  $region13: #{forward.6} parent=0 // pred_fallthru
    _
  // Predicated region
  $region14: #{forward.6} parent=0 // pred_check
    _
  $region15: #{forward.6} parent=0 // pred_check_branch
    %56 = sbr.rel (0) target = $region17
  $region16: #{forward.6} parent=0 // pred_region
    _
  $region17: #{forward.6} parent=0 // pred_fallthru
    _
  // Predicated region
  $region18: #{forward.6} parent=0 // pred_check
    _
  $region19: #{forward.6} parent=0 // pred_check_branch
    %58 = sbr.rel (0) target = $region21
  $region20: #{forward.6} parent=0 // pred_region
    _
  $region21: #{forward.6} parent=0 // pred_fallthru
    _
  // Predicated region
  $region22: #{forward.6} parent=0 // pred_check
    _
  $region23: #{forward.6} parent=0 // pred_check_branch
    %60 = sbr.rel (0) target = $region25
  $region24: #{forward.6} parent=0 // pred_region
    _
  $region25: #{forward.6} parent=0 // pred_fallthru
    _

// kernel: forward.4
$region0: #{forward.4}
  #allocation0 [shape = 'u32[]', space=smem, size = 0x4, offset = 0x4, fixed_abs, tag = 'smem constant byte address 0x4 - core index']
  #allocation1 [shape = 'u32[72,128]{1,0:T(1,128)}', space=vmem, size = 0x9000, scoped, tag = 'internal scratch']
  %s0 = inlined_call_operand.vmem [shape: f32[16,128], index: 0, kind: input, shape index: {}]
  %s1 = inlined_call_operand.vmem [shape: f32[128,128], index: 1, kind: input, shape index: {}]
  %s2 = inlined_call_operand.vmem [shape: f32[1,128], index: 2, kind: input, shape index: {}]
  %s3 = inlined_call_operand.vmem [shape: f32[128,128], index: 3, kind: input, shape index: {}]
  %s4 = inlined_call_operand.vmem [shape: f32[1,128], index: 4, kind: input, shape index: {}]
  %s5 = inlined_call_operand.vmem [shape: f32[16,128], index: 5, kind: output, shape index: {}]
  %s6 = sld [smem:[#allocation0]]
  $region30: #{forward.4} parent=0
    _
  %s8 = ssub.s32 1, %s6
  %s9 = scalar_select 0, %s8, %s6
  // Predicated region
  $region2: #{forward.4} parent=0 // pred_check
    _
  $region3: #{forward.4} parent=0 // pred_check_branch
    %11 = sbr.rel (0) target = $region5
  $region4: #{forward.4} parent=0 // pred_region
    _
  $region5: #{forward.4} parent=0 // pred_fallthru
    _
  // Predicated region
  $region6: #{forward.4} parent=0 // pred_check
    _
  $region7: #{forward.4} parent=0 // pred_check_branch
    %13 = sbr.rel (0) target = $region9
  $region8: #{forward.4} parent=0 // pred_region
    _
  $region9: #{forward.4} parent=0 // pred_fallthru
    _
  // Predicated region
  $region10: #{forward.4} parent=0 // pred_check
    _
  $region11: #{forward.4} parent=0 // pred_check_branch
    %15 = sbr.rel (0) target = $region13
  $region12: #{forward.4} parent=0 // pred_region
    _
  $region13: #{forward.4} parent=0 // pred_fallthru
    _
  // Predicated region
  $region14: #{forward.4} parent=0 // pred_check
    _
  $region15: #{forward.4} parent=0 // pred_check_branch
    %17 = sbr.rel (0) target = $region17
  $region16: #{forward.4} parent=0 // pred_region
    _
  $region17: #{forward.4} parent=0 // pred_fallthru
    _
  // Predicated region
  $region18: #{forward.4} parent=0 // pred_check
    _
  $region19: #{forward.4} parent=0 // pred_check_branch
    %19 = sbr.rel (0) target = $region21
  $region20: #{forward.4} parent=0 // pred_region
    _
  $region21: #{forward.4} parent=0 // pred_fallthru
    _
  %v20 = vld [vmem:[%s0] sm:$0xff]
  %v21 = vld [vmem:[%s0 + $0x8] sm:$0xff]
  %v22 = vld [vmem:[%s1] sm:$0xff]
  %v23 = vld [vmem:[%s1 + $0x8] sm:$0xff]
  %v24 = vld [vmem:[%s1 + $0x10] sm:$0xff]
  %v25 = vld [vmem:[%s1 + $0x18] sm:$0xff]
  %v26 = vld [vmem:[%s1 + $0x20] sm:$0xff]
  %v27 = vld [vmem:[%s1 + $0x28] sm:$0xff]
  %v28 = vld [vmem:[%s1 + $0x30] sm:$0xff]
  %v29 = vld [vmem:[%s1 + $0x38] sm:$0xff]
  %v30 = vld [vmem:[%s1 + $0x40] sm:$0xff]
  %v31 = vld [vmem:[%s1 + $0x48] sm:$0xff]
  %v32 = vld [vmem:[%s1 + $0x50] sm:$0xff]
  %v33 = vld [vmem:[%s1 + $0x58] sm:$0xff]
  %v34 = vld [vmem:[%s1 + $0x60] sm:$0xff]
  %v35 = vld [vmem:[%s1 + $0x68] sm:$0xff]
  %v36 = vld [vmem:[%s1 + $0x70] sm:$0xff]
  %v37 = vld [vmem:[%s1 + $0x78] sm:$0xff]
  %v38 = vld [vmem:[%s2] sm:$0x1]
  %v40 = vperm.slane %v38, 0
  %42 = vmatpush.msra.mxu0 %v37
  %43 = vmatpush.msra.mxu0 %v36
  %44 = vmatpush.msra.mxu0 %v35
  %45 = vmatpush.msra.mxu0 %v34
  %46 = vmatpush.msra.mxu0 %v33
  %47 = vmatpush.msra.mxu0 %v32
  %48 = vmatpush.msra.mxu0 %v31
  %49 = vmatpush.msra.mxu0 %v30
  %50 = vmatpush.msra.mxu0 %v29
  %51 = vmatpush.msra.mxu0 %v28
  %52 = vmatpush.msra.mxu0 %v27
  %53 = vmatpush.msra.mxu0 %v26
  %54 = vmatpush.msra.mxu0 %v25
  %55 = vmatpush.msra.mxu0 %v24
  %56 = vmatpush.msra.mxu0 %v23
  %57 = vmatpush.msra.mxu0 %v22
  %58 = vmatmul.f32.gmra.mxu0 %v20
  %v59 = vpop.f32.mrf.mxu0
  %v60 = vadd.f32 %v40, %v59
  %61 = vmatmul.f32.gmra.mxu0 %v21
  %v62 = vpop.f32.mrf.mxu0
  %v63 = vadd.f32 %v40, %v62
  %64 = vdwg.mxu0
  %vm65 = vcmp.gt.f32.partialorder %v60, 0.0
  %vm66 = vcmp.gt.f32.partialorder %v63, 0.0
  %v67 = vmul.f32 %v60, 0.01
  %v68 = vmul.f32 %v63, 0.01
  %v69 = vsel %vm65, %v60, %v67
  %v70 = vsel %vm66, %v63, %v68
  %v71 = vld [vmem:[%s3] sm:$0xff]
  %v72 = vld [vmem:[%s3 + $0x8] sm:$0xff]
  %v73 = vld [vmem:[%s3 + $0x10] sm:$0xff]
  %v74 = vld [vmem:[%s3 + $0x18] sm:$0xff]
  %v75 = vld [vmem:[%s3 + $0x20] sm:$0xff]
  %v76 = vld [vmem:[%s3 + $0x28] sm:$0xff]
  %v77 = vld [vmem:[%s3 + $0x30] sm:$0xff]
  %v78 = vld [vmem:[%s3 + $0x38] sm:$0xff]
  %v79 = vld [vmem:[%s3 + $0x40] sm:$0xff]
  %v80 = vld [vmem:[%s3 + $0x48] sm:$0xff]
  %v81 = vld [vmem:[%s3 + $0x50] sm:$0xff]
  %v82 = vld [vmem:[%s3 + $0x58] sm:$0xff]
  %v83 = vld [vmem:[%s3 + $0x60] sm:$0xff]
  %v84 = vld [vmem:[%s3 + $0x68] sm:$0xff]
  %v85 = vld [vmem:[%s3 + $0x70] sm:$0xff]
  %v86 = vld [vmem:[%s3 + $0x78] sm:$0xff]
  %v87 = vld [vmem:[%s4] sm:$0x1]
  %v89 = vperm.slane %v87, 0
  %91 = vmatpush.msra.mxu0 %v86
  %92 = vmatpush.msra.mxu0 %v85
  %93 = vmatpush.msra.mxu0 %v84
  %94 = vmatpush.msra.mxu0 %v83
  %95 = vmatpush.msra.mxu0 %v82
  %96 = vmatpush.msra.mxu0 %v81
  %97 = vmatpush.msra.mxu0 %v80
  %98 = vmatpush.msra.mxu0 %v79
  %99 = vmatpush.msra.mxu0 %v78
  %100 = vmatpush.msra.mxu0 %v77
  %101 = vmatpush.msra.mxu0 %v76
  %102 = vmatpush.msra.mxu0 %v75
  %103 = vmatpush.msra.mxu0 %v74
  %104 = vmatpush.msra.mxu0 %v73
  %105 = vmatpush.msra.mxu0 %v72
  %106 = vmatpush.msra.mxu0 %v71
  %107 = vmatmul.f32.gmra.mxu0 %v69
  %v108 = vpop.f32.mrf.mxu0
  %v109 = vadd.f32 %v89, %v108
  %110 = vmatmul.f32.gmra.mxu0 %v70
  %v111 = vpop.f32.mrf.mxu0
  %v112 = vadd.f32 %v89, %v111
  %113 = vdwg.mxu0
  %114 = vst [vmem:[%s5] sm:$0xff] %v109
  %115 = vst [vmem:[%s5 + $0x8] sm:$0xff] %v112
  // Predicated region
  $region22: #{forward.4} parent=0 // pred_check
    _
  $region23: #{forward.4} parent=0 // pred_check_branch
    %117 = sbr.rel (0) target = $region25
  $region24: #{forward.4} parent=0 // pred_region
    _
  $region25: #{forward.4} parent=0 // pred_fallthru
    _
  // Predicated region
  $region26: #{forward.4} parent=0 // pred_check
    _
  $region27: #{forward.4} parent=0 // pred_check_branch
    %119 = sbr.rel (0) target = $region29
  $region28: #{forward.4} parent=0 // pred_region
    _
  $region29: #{forward.4} parent=0 // pred_fallthru
    _

// kernel: forward.7
$region0: #{forward.7}
  #allocation0 [shape = 'u32[]', space=smem, size = 0x4, offset = 0x4, fixed_abs, tag = 'smem constant byte address 0x4 - core index']
  #allocation1 [shape = 'u32[72,128]{1,0:T(1,128)}', space=vmem, size = 0x9000, scoped, tag = 'internal scratch']
  %s0 = inlined_call_operand.vmem [shape: bf16[16,16], index: 0, kind: input, shape index: {}]
  %s1 = inlined_call_operand.vmem [shape: bf16[16,128], index: 1, kind: input, shape index: {}]
  %s2 = inlined_call_operand.vmem [shape: f32[16,128], index: 2, kind: input, shape index: {}]
  %s3 = inlined_call_operand.vmem [shape: f32[16,128], index: 3, kind: input, shape index: {}]
  %s4 = inlined_call_operand.hbm [shape: f32[16,128], index: 4, kind: output, shape index: {}]
  %s5 = sld [smem:[#allocation0]]
  $region26: #{forward.7} parent=0
    _
  %s7 = ssub.s32 1, %s5
  %s8 = scalar_select 0, %s7, %s5
  $region1: #{forward.7} parent=0
    #allocation2 [shape = 'u8[8192]{0}', space=vmem, size = 0x2000, scoped, tag = 'output window, operand 0, single buffered']
    #allocation3 [shape = 's32[1]{0}', space=sflag, size = 0x4, scoped, tag = 'scoped memory for forward.7']
    %9 = vsyncpa [#allocation3], 0
    // Predicated region
    $region2: #{forward.7} parent=1 // pred_check
      _
    $region3: #{forward.7} parent=1 // pred_check_branch
      %11 = sbr.rel (0) target = $region5
    $region4: #{forward.7} parent=1 // pred_region
      _
    $region5: #{forward.7} parent=1 // pred_fallthru
      _
    // Predicated region
    $region6: #{forward.7} parent=1 // pred_check
      _
    $region7: #{forward.7} parent=1 // pred_check_branch
      %13 = sbr.rel (0) target = $region9
    $region8: #{forward.7} parent=1 // pred_region
      _
    $region9: #{forward.7} parent=1 // pred_fallthru
      _
    // Predicated region
    $region10: #{forward.7} parent=1 // pred_check
      _
    $region11: #{forward.7} parent=1 // pred_check_branch
      %15 = sbr.rel (0) target = $region13
    $region12: #{forward.7} parent=1 // pred_region
      _
    $region13: #{forward.7} parent=1 // pred_fallthru
      _
    // Predicated region
    $region14: #{forward.7} parent=1 // pred_check
      _
    $region15: #{forward.7} parent=1 // pred_check_branch
      %17 = sbr.rel (0) target = $region17
    $region16: #{forward.7} parent=1 // pred_region
      _
    $region17: #{forward.7} parent=1 // pred_fallthru
      _
    %v19 = vld [vmem:[%s0] sm:$0xf]
    %v20 = vld [vmem:[%s0 + $0x4] sm:$0xf]
    %v21 = vld [vmem:[%s1] sm:$0xf]
    %v22 = vld [vmem:[%s1 + $0x4] sm:$0xf]
    %v25 = vunpack.c.l.b16 %v19
    %v26 = vunpack.c.l.b16 %v20
    %v27 = vpack.c.b16 %v26, %v25
    %v30 = vunpack.c.l.b16 %v21
    %v31 = vunpack.c.l.b16 %v22
    %v32 = vpack.c.b16 %v31, %v30
    %vm34 = vcmask 130048
    %v36 = vsel %vm34, %v27, 0
    %38 = vmatpush.bf16.msra.mxu0 0
    %39 = vmatpush.bf16.msra.mxu0 0
    %40 = vmatpush.bf16.msra.mxu0 0
    %41 = vmatpush.bf16.msra.mxu0 0
    %42 = vmatpush.bf16.msra.mxu0 0
    %43 = vmatpush.bf16.msra.mxu0 0
    %44 = vmatpush.bf16.msra.mxu0 0
    %45 = vmatpush.bf16.msra.mxu0 %v32
    %46 = vmatmul.bf16.gmra.mxu0 %v36
    %v47 = vpop.f32.mrf.mxu0
    %v48 = vadd.f32 0.0, %v47
    %v49 = vpop.f32.mrf.mxu0
    %v50 = vadd.f32 0.0, %v49
    %51 = vdwg.mxu0
    %v52 = vld [vmem:[%s3] sm:$0xff]
    %v53 = vld [vmem:[%s3 + $0x8] sm:$0xff]
    %v54 = vld [vmem:[%s2] sm:$0xff]
    %v55 = vld [vmem:[%s2 + $0x8] sm:$0xff]
    %v56 = vadd.f32 %v52, %v54
    %v57 = vadd.f32 %v53, %v55
    %v58 = vadd.f32 %v56, %v48
    %v59 = vadd.f32 %v57, %v50
    %60 = vst [vmem:[#allocation2] sm:$0xff] %v58
    %61 = vst [vmem:[#allocation2 + $0x8] sm:$0xff] %v59
    // Predicated region
    $region18: #{forward.7} parent=1 // pred_check
      _
    $region19: #{forward.7} parent=1 // pred_check_branch
      %63 = sbr.rel (0) target = $region21
    $region20: #{forward.7} parent=1 // pred_region
      %65 = vsyncadd [#allocation3], 0
      %s66 = sshll.u32 [#allocation2], 4
      %s67 = int_to_ptr.vmem [resolvable:$true] %s66
      %s68 = sshll.u32 %s4, 4
      %s69 = int_to_ptr.hbm [resolvable:$true] %s68
      %74 = dma.vmem_to_hbm [thread:$0]  %s67, 256, %s69, [#allocation3], 128, 128, 8
    $region21: #{forward.7} parent=1 // pred_fallthru
      _
    // Predicated region
    $region22: #{forward.7} parent=1 // pred_check
      _
    $region23: #{forward.7} parent=1 // pred_check_branch
      %76 = sbr.rel (0) target = $region25
    $region24: #{forward.7} parent=1 // pred_region
      %78 = dma.done [#allocation3], 256
    $region25: #{forward.7} parent=1 // pred_fallthru
      _
    %79 = vsyncpa [#allocation3], 1

</llo_original>
